<compile_context>
chip_gen: v6e
topology: v6e:2x2x1
jax: 0.10.0
libtpu: 0.0.40
codegen_flags: <defaults>
</compile_context>

<pallas_src>
import functools

import jax
import jax.numpy as jnp
import numpy as np
from jax.experimental import pallas as pl
from jax.experimental.pallas import tpu as pltpu


# 3x3 tap offsets, row-major over (dh, dw); tap index t == kernel pos (dh+1, dw+1).
_OFFSETS = tuple((dh, dw) for dh in (-1, 0, 1) for dw in (-1, 0, 1))


def _make_pad_masks(H, W):
    """(9, H*W) float32 masks: 1 where the tap reads a valid (in-image) pixel."""
    hh, ww = np.meshgrid(np.arange(H), np.arange(W), indexing="ij")
    masks = np.zeros((9, H * W), np.float32)
    for t, (dh, dw) in enumerate(_OFFSETS):
        valid = ((hh + dh >= 0) & (hh + dh < H) &
                 (ww + dw >= 0) & (ww + dw < W))
        masks[t] = valid.reshape(-1).astype(np.float32)
    return masks


def _im2col(a, masks, *, W, HW):
    """a: (Cin, HW) channel-major activation slab -> (9*Cin, HW) im2col patches.

    Tap (dh, dw) reads pixel (h+dh, w+dw) == flat lane p + dh*W + dw, so each
    tap is a lane rotation (XLU, cheap) of the same resident slab; out-of-image
    pixels are zeroed with the static per-tap mask (SAME zero padding).
    """
    taps = []
    for t, (dh, dw) in enumerate(_OFFSETS):
        s = dh * W + dw
        shifted = a if s == 0 else pltpu.roll(a, shift=(-s) % HW, axis=1)
        taps.append(shifted * masks[t:t + 1, :])
    return jnp.concatenate(taps, axis=0)


def _repn_bottleneck_kernel(mask_ref, x_ref, w1_ref, b1_ref, w2_ref, b2_ref,
                            o_ref, *, add, H, W):
    """One image per grid step; channel-major, spatial flattened into lanes.

    mask_ref: (9, H*W)      per-tap SAME-padding validity masks (0/1, f32)
    x_ref:    (1, C1, H*W)  input image (also residual source)
    w1_ref:   (Cm, 9*C1)    cv1 fused RepConvN weight (3x3 + 1x1 + both BNs)
    b1_ref:   (Cm, 1)       cv1 fused bias
    w2_ref:   (C2, 9*Cm)    cv2 fused weight (3x3 conv + BN)
    b2_ref:   (C2, 1)       cv2 fused bias
    o_ref:    (1, C2, H*W)  lane-dense output slab
    """
    HW = H * W
    masks = mask_ref[...]
    x = x_ref[0]                                             # (C1, HW)

    # ---- cv1: fused RepConvN 3x3 as a single MXU matmul + bias + SiLU -----
    p1 = _im2col(x, masks, W=W, HW=HW)                       # (9*C1, HW)
    a1 = jnp.dot(w1_ref[...], p1,
                 preferred_element_type=jnp.float32) + b1_ref[...]
    y = a1 * jax.nn.sigmoid(a1)                              # SiLU, (Cm, HW) f32

    # ---- cv2: 3x3 conv as a single MXU matmul + bias + SiLU ---------------
    p2 = _im2col(y, masks, W=W, HW=HW)                       # (9*Cm, HW)
    a2 = jnp.dot(w2_ref[...], p2,
                 preferred_element_type=jnp.float32) + b2_ref[...]
    z = a2 * jax.nn.sigmoid(a2)                              # (C2, HW) f32

    if add:                                                  # residual (c1 == c2)
        z = z + x.astype(jnp.float32)
    o_ref[0] = z.astype(o_ref.dtype)


def repn_bottleneck_pallas(x_nchw, w1, b1, w2, b2, *, add):
    """x_nchw: (N, C1, H, W); w1: (3,3,C1,Cm) HWIO fused; w2: (3,3,Cm,C2) HWIO fused."""
    N, C1, H, W = x_nchw.shape
    Cm = w1.shape[3]
    C2 = w2.shape[3]
    HW = H * W

    # NCHW is already channel-major: only a reshape is needed (layout plumbing).
    x_flat = x_nchw.reshape(N, C1, HW)
    # HWIO -> (Cout, kh*kw*Cin), matching the im2col row order (tap-major, Cin-minor).
    w1m = jnp.transpose(w1, (3, 0, 1, 2)).reshape(Cm, 9 * C1)
    w2m = jnp.transpose(w2, (3, 0, 1, 2)).reshape(C2, 9 * Cm)
    b1c = b1.reshape(Cm, 1)
    b2c = b2.reshape(C2, 1)
    masks = jnp.asarray(_make_pad_masks(H, W))               # (9, HW)

    kernel = functools.partial(_repn_bottleneck_kernel, add=add, H=H, W=W)
    out = pl.pallas_call(
        kernel,
        out_shape=jax.ShapeDtypeStruct((N, C2, HW), x_nchw.dtype),
        grid_spec=pltpu.PrefetchScalarGridSpec(
            num_scalar_prefetch=0,
            grid=(N,),
            in_specs=[
                pl.BlockSpec((9, HW), lambda n: (0, 0)),
                pl.BlockSpec((1, C1, HW), lambda n: (n, 0, 0)),
                pl.BlockSpec((Cm, 9 * C1), lambda n: (0, 0)),
                pl.BlockSpec((Cm, 1), lambda n: (0, 0)),
                pl.BlockSpec((C2, 9 * Cm), lambda n: (0, 0)),
                pl.BlockSpec((C2, 1), lambda n: (0, 0)),
            ],
            out_specs=pl.BlockSpec((1, C2, HW), lambda n: (n, 0, 0)),
        ),
        # Batch elements are independent -> let v7x shard them over both TCs.
        compiler_params=pltpu.CompilerParams(
            dimension_semantics=("parallel",)),
    )(masks, x_flat, w1m, b1c, w2m, b2c)
    return out.reshape(N, C2, H, W)


# ------------------------- parameter construction --------------------------

def _fuse_conv_bn(w_hwio, gamma, beta, mean, var, eps=1e-5):
    """Fold eval-mode BatchNorm2d into a bias-free conv (exact)."""
    scale = gamma / jnp.sqrt(var + eps)
    w_f = w_hwio * scale[None, None, None, :]
    b_f = beta - mean * scale
    return w_f, b_f


def make_params(key, c1, c2, e=0.5):
    """Deterministic synthetic parameters for RepNBottleneck(c1, c2)."""
    c_ = int(c2 * e)
    ks = jax.random.split(key, 12)

    def bn(k, c):
        k0, k1, k2, k3 = jax.random.split(k, 4)
        gamma = 1.0 + 0.1 * jax.random.normal(k0, (c,), jnp.float32)
        beta = 0.05 * jax.random.normal(k1, (c,), jnp.float32)
        mean = 0.1 * jax.random.normal(k2, (c,), jnp.float32)
        var = 0.5 + jnp.abs(jax.random.normal(k3, (c,), jnp.float32)) * 0.5
        return gamma, beta, mean, var

    # RepConvN branches (cv1): 3x3 conv+BN and 1x1 conv+BN
    wa = 0.2 * jax.random.normal(ks[0], (3, 3, c1, c_), jnp.float32)
    wb = 0.2 * jax.random.normal(ks[1], (1, 1, c1, c_), jnp.float32)
    wa_f, ba_f = _fuse_conv_bn(wa, *bn(ks[2], c_))
    wb_f, bb_f = _fuse_conv_bn(wb, *bn(ks[3], c_))
    # fold 1x1 branch into center tap of the 3x3 kernel (RepVGG-style, exact)
    w1 = wa_f.at[1, 1].add(wb_f[0, 0])
    b1 = ba_f + bb_f

    # cv2: 3x3 conv + BN
    wc = 0.2 * jax.random.normal(ks[4], (3, 3, c_, c2), jnp.float32)
    w2, b2 = _fuse_conv_bn(wc, *bn(ks[5], c2))
    return w1, b1, w2, b2


# ----------------------------- pure-JAX reference --------------------------

def _reference(x_nchw, w1, b1, w2, b2, add):
    def conv3x3(x, w, b):
        out = jax.lax.conv_general_dilated(
            x, w, window_strides=(1, 1), padding="SAME",
            dimension_numbers=("NCHW", "HWIO", "NCHW"))
        return out + b[None, :, None, None]

    def silu(v):
        return v * jax.nn.sigmoid(v)

    y = silu(conv3x3(x_nchw, w1, b1))
    z = silu(conv3x3(y, w2, b2))
    return x_nchw + z if add else z


if __name__ == "__main__":
    # Shapes consistent with the module: NCHW (2, 4, 16, 16), c1 == c2 -> shortcut.
    N, C1, H, W = 2, 4, 16, 16
    C2 = 4
    add = True

    key = jax.random.PRNGKey(0)
    kx, kp = jax.random.split(key)
    x_nchw = jax.random.normal(kx, (N, C1, H, W), jnp.float32)

    w1, b1, w2, b2 = make_params(kp, C1, C2, e=0.5)

    out = repn_bottleneck_pallas(x_nchw, w1, b1, w2, b2, add=add)
    out = jax.block_until_ready(out)

    ref = jax.block_until_ready(_reference(x_nchw, w1, b1, w2, b2, add))
    assert out.shape == (N, C2, H, W)
    np.testing.assert_allclose(np.asarray(out), np.asarray(ref),
                               rtol=2e-3, atol=2e-3)
    print("KERNEL_OK")
</pallas_src>

<mosaic_0001>
module attributes {stable_mosaic.version = 11 : i64} {
  func.func @_repn_bottleneck_kernel(%arg0: i32, %arg1: memref<9x256xf32, #tpu.memory_space<vmem>>, %arg2: memref<1x4x256xf32, #tpu.memory_space<vmem>>, %arg3: memref<2x36xf32, #tpu.memory_space<vmem>>, %arg4: memref<2x1xf32, #tpu.memory_space<vmem>>, %arg5: memref<4x18xf32, #tpu.memory_space<vmem>>, %arg6: memref<4x1xf32, #tpu.memory_space<vmem>>, %arg7: memref<1x4x256xf32, #tpu.memory_space<vmem>>) attributes {dimension_semantics = [#tpu.dimension_semantics<parallel>], iteration_bounds = array<i64: 2>, scalar_prefetch = 0 : i64, scratch_operands = 0 : i64, tpu.core_type = #tpu.core_type<tc>, window_params = [{pipeline_mode = #tpu.pipeline_mode<synchronous>, transform_indices = @transform_0, window_bounds = array<i64: 9, 256>}, {transform_indices = @transform_1, window_bounds = array<i64: 1, 4, 256>}, {pipeline_mode = #tpu.pipeline_mode<synchronous>, transform_indices = @transform_2, window_bounds = array<i64: 2, 36>}, {pipeline_mode = #tpu.pipeline_mode<synchronous>, transform_indices = @transform_3, window_bounds = array<i64: 2, 1>}, {pipeline_mode = #tpu.pipeline_mode<synchronous>, transform_indices = @transform_4, window_bounds = array<i64: 4, 18>}, {pipeline_mode = #tpu.pipeline_mode<synchronous>, transform_indices = @transform_5, window_bounds = array<i64: 4, 1>}, {transform_indices = @transform_6, window_bounds = array<i64: 1, 4, 256>}]} {
    %c0 = arith.constant 0 : index
    %c0_0 = arith.constant 0 : index
    %0 = vector.load %arg1[%c0, %c0_0] : memref<9x256xf32, #tpu.memory_space<vmem>>, vector<9x256xf32>
    %c0_1 = arith.constant 0 : index
    %c0_2 = arith.constant 0 : index
    %c0_3 = arith.constant 0 : index
    %1 = vector.load %arg2[%c0_1, %c0_2, %c0_3] : memref<1x4x256xf32, #tpu.memory_space<vmem>>, vector<1x4x256xf32>
    %2 = vector.shape_cast %1 : vector<1x4x256xf32> to vector<4x256xf32>
    %c17_i32 = arith.constant 17 : i32
    %3 = tpu.dynamic_rotate %2 by %c17_i32 dim 1 : vector<4x256xf32>, i32 -> vector<4x256xf32>
    %4 = vector.extract_strided_slice %0 {offsets = [0, 0], sizes = [1, 256], strides = [1, 1]} : vector<9x256xf32> to vector<1x256xf32>
    %5 = vector.broadcast %4 : vector<1x256xf32> to vector<4x256xf32>
    %6 = arith.mulf %3, %5 : vector<4x256xf32>
    %c16_i32 = arith.constant 16 : i32
    %7 = tpu.dynamic_rotate %2 by %c16_i32 dim 1 : vector<4x256xf32>, i32 -> vector<4x256xf32>
    %8 = vector.extract_strided_slice %0 {offsets = [1, 0], sizes = [1, 256], strides = [1, 1]} : vector<9x256xf32> to vector<1x256xf32>
    %9 = vector.broadcast %8 : vector<1x256xf32> to vector<4x256xf32>
    %10 = arith.mulf %7, %9 : vector<4x256xf32>
    %c15_i32 = arith.constant 15 : i32
    %11 = tpu.dynamic_rotate %2 by %c15_i32 dim 1 : vector<4x256xf32>, i32 -> vector<4x256xf32>
    %12 = vector.extract_strided_slice %0 {offsets = [2, 0], sizes = [1, 256], strides = [1, 1]} : vector<9x256xf32> to vector<1x256xf32>
    %13 = vector.broadcast %12 : vector<1x256xf32> to vector<4x256xf32>
    %14 = arith.mulf %11, %13 : vector<4x256xf32>
    %c1_i32 = arith.constant 1 : i32
    %15 = tpu.dynamic_rotate %2 by %c1_i32 dim 1 : vector<4x256xf32>, i32 -> vector<4x256xf32>
    %16 = vector.extract_strided_slice %0 {offsets = [3, 0], sizes = [1, 256], strides = [1, 1]} : vector<9x256xf32> to vector<1x256xf32>
    %17 = vector.broadcast %16 : vector<1x256xf32> to vector<4x256xf32>
    %18 = arith.mulf %15, %17 : vector<4x256xf32>
    %19 = vector.extract_strided_slice %0 {offsets = [4, 0], sizes = [1, 256], strides = [1, 1]} : vector<9x256xf32> to vector<1x256xf32>
    %20 = vector.broadcast %19 : vector<1x256xf32> to vector<4x256xf32>
    %21 = arith.mulf %2, %20 : vector<4x256xf32>
    %c255_i32 = arith.constant 255 : i32
    %22 = tpu.dynamic_rotate %2 by %c255_i32 dim 1 : vector<4x256xf32>, i32 -> vector<4x256xf32>
    %23 = vector.extract_strided_slice %0 {offsets = [5, 0], sizes = [1, 256], strides = [1, 1]} : vector<9x256xf32> to vector<1x256xf32>
    %24 = vector.broadcast %23 : vector<1x256xf32> to vector<4x256xf32>
    %25 = arith.mulf %22, %24 : vector<4x256xf32>
    %c241_i32 = arith.constant 241 : i32
    %26 = tpu.dynamic_rotate %2 by %c241_i32 dim 1 : vector<4x256xf32>, i32 -> vector<4x256xf32>
    %27 = vector.extract_strided_slice %0 {offsets = [6, 0], sizes = [1, 256], strides = [1, 1]} : vector<9x256xf32> to vector<1x256xf32>
    %28 = vector.broadcast %27 : vector<1x256xf32> to vector<4x256xf32>
    %29 = arith.mulf %26, %28 : vector<4x256xf32>
    %c240_i32 = arith.constant 240 : i32
    %30 = tpu.dynamic_rotate %2 by %c240_i32 dim 1 : vector<4x256xf32>, i32 -> vector<4x256xf32>
    %31 = vector.extract_strided_slice %0 {offsets = [7, 0], sizes = [1, 256], strides = [1, 1]} : vector<9x256xf32> to vector<1x256xf32>
    %32 = vector.broadcast %31 : vector<1x256xf32> to vector<4x256xf32>
    %33 = arith.mulf %30, %32 : vector<4x256xf32>
    %c239_i32 = arith.constant 239 : i32
    %34 = tpu.dynamic_rotate %2 by %c239_i32 dim 1 : vector<4x256xf32>, i32 -> vector<4x256xf32>
    %35 = vector.extract_strided_slice %0 {offsets = [8, 0], sizes = [1, 256], strides = [1, 1]} : vector<9x256xf32> to vector<1x256xf32>
    %36 = vector.broadcast %35 : vector<1x256xf32> to vector<4x256xf32>
    %37 = arith.mulf %34, %36 : vector<4x256xf32>
    %38 = tpu.concatenate %6, %10, %14, %18, %21, %25, %29, %33, %37 in 0 : vector<4x256xf32>, vector<4x256xf32>, vector<4x256xf32>, vector<4x256xf32>, vector<4x256xf32>, vector<4x256xf32>, vector<4x256xf32>, vector<4x256xf32>, vector<4x256xf32> -> vector<36x256xf32>
    %c0_4 = arith.constant 0 : index
    %c0_5 = arith.constant 0 : index
    %39 = vector.load %arg3[%c0_4, %c0_5] : memref<2x36xf32, #tpu.memory_space<vmem>>, vector<2x36xf32>
    %cst = arith.constant dense<0.000000e+00> : vector<2x256xf32>
    %40 = tpu.matmul %39, %38, %cst {dimension_numbers = #tpu.dot_dimension_numbers<[1], [0], [0], [1], [0, 0, 1, 1], [], []>} : vector<2x36xf32>, vector<36x256xf32>, vector<2x256xf32> -> vector<2x256xf32>
    %c0_6 = arith.constant 0 : index
    %c0_7 = arith.constant 0 : index
    %41 = vector.load %arg4[%c0_6, %c0_7] : memref<2x1xf32, #tpu.memory_space<vmem>>, vector<2x1xf32>
    %42 = vector.broadcast %41 : vector<2x1xf32> to vector<2x256xf32>
    %43 = arith.addf %40, %42 : vector<2x256xf32>
    %44 = arith.negf %43 : vector<2x256xf32>
    %45 = math.exp %44 : vector<2x256xf32>
    %cst_8 = arith.constant 1.000000e+00 : f32
    %46 = vector.broadcast %cst_8 : f32 to vector<2x256xf32>
    %47 = arith.addf %46, %45 : vector<2x256xf32>
    %48 = arith.divf %46, %47 : vector<2x256xf32>
    %49 = arith.mulf %43, %48 : vector<2x256xf32>
    %c17_i32_9 = arith.constant 17 : i32
    %50 = tpu.dynamic_rotate %49 by %c17_i32_9 dim 1 : vector<2x256xf32>, i32 -> vector<2x256xf32>
    %51 = vector.extract_strided_slice %0 {offsets = [0, 0], sizes = [1, 256], strides = [1, 1]} : vector<9x256xf32> to vector<1x256xf32>
    %52 = vector.broadcast %51 : vector<1x256xf32> to vector<2x256xf32>
    %53 = arith.mulf %50, %52 : vector<2x256xf32>
    %c16_i32_10 = arith.constant 16 : i32
    %54 = tpu.dynamic_rotate %49 by %c16_i32_10 dim 1 : vector<2x256xf32>, i32 -> vector<2x256xf32>
    %55 = vector.extract_strided_slice %0 {offsets = [1, 0], sizes = [1, 256], strides = [1, 1]} : vector<9x256xf32> to vector<1x256xf32>
    %56 = vector.broadcast %55 : vector<1x256xf32> to vector<2x256xf32>
    %57 = arith.mulf %54, %56 : vector<2x256xf32>
    %c15_i32_11 = arith.constant 15 : i32
    %58 = tpu.dynamic_rotate %49 by %c15_i32_11 dim 1 : vector<2x256xf32>, i32 -> vector<2x256xf32>
    %59 = vector.extract_strided_slice %0 {offsets = [2, 0], sizes = [1, 256], strides = [1, 1]} : vector<9x256xf32> to vector<1x256xf32>
    %60 = vector.broadcast %59 : vector<1x256xf32> to vector<2x256xf32>
    %61 = arith.mulf %58, %60 : vector<2x256xf32>
    %c1_i32_12 = arith.constant 1 : i32
    %62 = tpu.dynamic_rotate %49 by %c1_i32_12 dim 1 : vector<2x256xf32>, i32 -> vector<2x256xf32>
    %63 = vector.extract_strided_slice %0 {offsets = [3, 0], sizes = [1, 256], strides = [1, 1]} : vector<9x256xf32> to vector<1x256xf32>
    %64 = vector.broadcast %63 : vector<1x256xf32> to vector<2x256xf32>
    %65 = arith.mulf %62, %64 : vector<2x256xf32>
    %66 = vector.extract_strided_slice %0 {offsets = [4, 0], sizes = [1, 256], strides = [1, 1]} : vector<9x256xf32> to vector<1x256xf32>
    %67 = vector.broadcast %66 : vector<1x256xf32> to vector<2x256xf32>
    %68 = arith.mulf %49, %67 : vector<2x256xf32>
    %c255_i32_13 = arith.constant 255 : i32
    %69 = tpu.dynamic_rotate %49 by %c255_i32_13 dim 1 : vector<2x256xf32>, i32 -> vector<2x256xf32>
    %70 = vector.extract_strided_slice %0 {offsets = [5, 0], sizes = [1, 256], strides = [1, 1]} : vector<9x256xf32> to vector<1x256xf32>
    %71 = vector.broadcast %70 : vector<1x256xf32> to vector<2x256xf32>
    %72 = arith.mulf %69, %71 : vector<2x256xf32>
    %c241_i32_14 = arith.constant 241 : i32
    %73 = tpu.dynamic_rotate %49 by %c241_i32_14 dim 1 : vector<2x256xf32>, i32 -> vector<2x256xf32>
    %74 = vector.extract_strided_slice %0 {offsets = [6, 0], sizes = [1, 256], strides = [1, 1]} : vector<9x256xf32> to vector<1x256xf32>
    %75 = vector.broadcast %74 : vector<1x256xf32> to vector<2x256xf32>
    %76 = arith.mulf %73, %75 : vector<2x256xf32>
    %c240_i32_15 = arith.constant 240 : i32
    %77 = tpu.dynamic_rotate %49 by %c240_i32_15 dim 1 : vector<2x256xf32>, i32 -> vector<2x256xf32>
    %78 = vector.extract_strided_slice %0 {offsets = [7, 0], sizes = [1, 256], strides = [1, 1]} : vector<9x256xf32> to vector<1x256xf32>
    %79 = vector.broadcast %78 : vector<1x256xf32> to vector<2x256xf32>
    %80 = arith.mulf %77, %79 : vector<2x256xf32>
    %c239_i32_16 = arith.constant 239 : i32
    %81 = tpu.dynamic_rotate %49 by %c239_i32_16 dim 1 : vector<2x256xf32>, i32 -> vector<2x256xf32>
    %82 = vector.extract_strided_slice %0 {offsets = [8, 0], sizes = [1, 256], strides = [1, 1]} : vector<9x256xf32> to vector<1x256xf32>
    %83 = vector.broadcast %82 : vector<1x256xf32> to vector<2x256xf32>
    %84 = arith.mulf %81, %83 : vector<2x256xf32>
    %85 = tpu.concatenate %53, %57, %61, %65, %68, %72, %76, %80, %84 in 0 : vector<2x256xf32>, vector<2x256xf32>, vector<2x256xf32>, vector<2x256xf32>, vector<2x256xf32>, vector<2x256xf32>, vector<2x256xf32>, vector<2x256xf32>, vector<2x256xf32> -> vector<18x256xf32>
    %c0_17 = arith.constant 0 : index
    %c0_18 = arith.constant 0 : index
    %86 = vector.load %arg5[%c0_17, %c0_18] : memref<4x18xf32, #tpu.memory_space<vmem>>, vector<4x18xf32>
    %cst_19 = arith.constant dense<0.000000e+00> : vector<4x256xf32>
    %87 = tpu.matmul %86, %85, %cst_19 {dimension_numbers = #tpu.dot_dimension_numbers<[1], [0], [0], [1], [0, 0, 1, 1], [], []>} : vector<4x18xf32>, vector<18x256xf32>, vector<4x256xf32> -> vector<4x256xf32>
    %c0_20 = arith.constant 0 : index
    %c0_21 = arith.constant 0 : index
    %88 = vector.load %arg6[%c0_20, %c0_21] : memref<4x1xf32, #tpu.memory_space<vmem>>, vector<4x1xf32>
    %89 = vector.broadcast %88 : vector<4x1xf32> to vector<4x256xf32>
    %90 = arith.addf %87, %89 : vector<4x256xf32>
    %91 = arith.negf %90 : vector<4x256xf32>
    %92 = math.exp %91 : vector<4x256xf32>
    %cst_22 = arith.constant 1.000000e+00 : f32
    %93 = vector.broadcast %cst_22 : f32 to vector<4x256xf32>
    %94 = arith.addf %93, %92 : vector<4x256xf32>
    %95 = arith.divf %93, %94 : vector<4x256xf32>
    %96 = arith.mulf %90, %95 : vector<4x256xf32>
    %97 = arith.addf %96, %2 : vector<4x256xf32>
    %c0_23 = arith.constant 0 : index
    %c0_24 = arith.constant 0 : index
    %c0_25 = arith.constant 0 : index
    %98 = vector.load %arg7[%c0_23, %c0_24, %c0_25] : memref<1x4x256xf32, #tpu.memory_space<vmem>>, vector<1x4x256xf32>
    %99 = vector.shape_cast %98 : vector<1x4x256xf32> to vector<4x256xf32>
    %100 = vector.shape_cast %97 : vector<4x256xf32> to vector<1x4x256xf32>
    tpu.vector_store %arg7[%c0_23, %c0_24, %c0_25], %100 {strides = array<i32>} : memref<1x4x256xf32, #tpu.memory_space<vmem>>, vector<1x4x256xf32>,
    return
  }
  func.func @transform_0(%arg0: i32) -> (i32, i32) {
    %c0_i32 = arith.constant 0 : i32
    %c0_i32_0 = arith.constant 0 : i32
    %c0_i32_1 = arith.constant 0 : i32
    return %c0_i32, %c0_i32_0 : i32, i32
  }
  func.func @transform_1(%arg0: i32) -> (i32, i32, i32) {
    %c0_i32 = arith.constant 0 : i32
    %c0_i32_0 = arith.constant 0 : i32
    %c0_i32_1 = arith.constant 0 : i32
    return %arg0, %c0_i32, %c0_i32_0 : i32, i32, i32
  }
  func.func @transform_2(%arg0: i32) -> (i32, i32) {
    %c0_i32 = arith.constant 0 : i32
    %c0_i32_0 = arith.constant 0 : i32
    %c0_i32_1 = arith.constant 0 : i32
    return %c0_i32, %c0_i32_0 : i32, i32
  }
  func.func @transform_3(%arg0: i32) -> (i32, i32) {
    %c0_i32 = arith.constant 0 : i32
    %c0_i32_0 = arith.constant 0 : i32
    %c0_i32_1 = arith.constant 0 : i32
    return %c0_i32, %c0_i32_0 : i32, i32
  }
  func.func @transform_4(%arg0: i32) -> (i32, i32) {
    %c0_i32 = arith.constant 0 : i32
    %c0_i32_0 = arith.constant 0 : i32
    %c0_i32_1 = arith.constant 0 : i32
    return %c0_i32, %c0_i32_0 : i32, i32
  }
  func.func @transform_5(%arg0: i32) -> (i32, i32) {
    %c0_i32 = arith.constant 0 : i32
    %c0_i32_0 = arith.constant 0 : i32
    %c0_i32_1 = arith.constant 0 : i32
    return %c0_i32, %c0_i32_0 : i32, i32
  }
  func.func @transform_6(%arg0: i32) -> (i32, i32, i32) {
    %c0_i32 = arith.constant 0 : i32
    %c0_i32_0 = arith.constant 0 : i32
    %c0_i32_1 = arith.constant 0 : i32
    return %arg0, %c0_i32, %c0_i32_0 : i32, i32, i32
  }
}

</mosaic_0001>

<llo_original>
// kernel: tpu_custom_call.1
$region0: #{tpu_custom_call.1}
  #allocation0 [shape = 'u32[]', space=smem, size = 0x4, offset = 0x4, fixed_abs, tag = 'smem constant byte address 0x4 - core index']
  #allocation1 [shape = 'u32[144,128]{1,0:T(1,128)}', space=vmem, size = 0x12000, scoped, tag = 'internal scratch']
  %s0 = inlined_call_operand.hbm [shape: f32[9,256], index: 0, kind: input, shape index: {}]
  %s1 = inlined_call_operand.hbm [shape: f32[2,4,256], index: 1, kind: input, shape index: {}]
  %s2 = inlined_call_operand.vmem [shape: f32[2,36], index: 2, kind: input, shape index: {}]
  %s3 = inlined_call_operand.vmem [shape: f32[2,1], index: 3, kind: input, shape index: {}]
  %s4 = inlined_call_operand.vmem [shape: f32[4,18], index: 4, kind: input, shape index: {}]
  %s5 = inlined_call_operand.vmem [shape: f32[4,1], index: 5, kind: input, shape index: {}]
  %s6 = inlined_call_operand.hbm [shape: f32[2,4,256], index: 6, kind: output, shape index: {}]
  %s7 = sld [smem:[#allocation0]]
  $region65: #{tpu_custom_call.1} parent=0
    _
  %s9 = ssub.s32 1, %s7
  %s10 = scalar_select 0, %s9, %s7
  $region1: #{tpu_custom_call.1} parent=0
    #allocation2 [shape = 'u8[16384]{0}', space=vmem, size = 0x4000, scoped, tag = 'input window, operand 0, single buffered']
    #allocation3 [shape = 's32[2]{0}', space=sflag, size = 0x8, scoped, tag = 'scoped memory for tpu_custom_call.1']
    #allocation4 [shape = 's32[2]{0}', space=sflag, size = 0x8, scoped, tag = 'scoped memory for tpu_custom_call.1']
    #allocation5 [shape = 'u8[8192]{0}', space=vmem, size = 0x2000, scoped, tag = 'input window, operand 1']
    #allocation6 [shape = 's32[2]{0}', space=sflag, size = 0x8, scoped, tag = 'scoped memory for tpu_custom_call.1']
    #allocation7 [shape = 'u8[8192]{0}', space=vmem, size = 0x2000, scoped, tag = 'output window, operand 0']
    %11 = vsyncpa [#allocation3], 0
    %12 = vsyncpa [#allocation6], 0
    %s13 = scalar_lea.sflag [#allocation6], 1
    %14 = vsyncpa %s13, 0
    %15 = vsyncpa [#allocation4], 0
    %s16 = scalar_lea.sflag [#allocation4], 1
    %17 = vsyncpa %s16, 0
    loop: start=0, step=1, limit=4
    $region2: #{tpu_custom_call.1} parent=1 // loop_pre_header
      _
    $region3: #{tpu_custom_call.1} parent=1 // loop_header
      %s19 = sphi 0, %s23
      %p20 = scmp.ge.s32.totalorder %s19, 4
      %s27 = sphi 0, %s27
      %s29 = sphi 0, %s27
      %s30 = sphi 0, %s29
      %s44 = sphi 0, %s30
      %s50 = sphi 0, %s52
      %s53 = sphi 0, %s50
      %s54 = sphi 0, %s53
      %s70 = sphi 0, %s54
      %s74 = sphi 0, %s74
      %s76 = sphi 0, %s74
      %s77 = sphi 0, %s76
      %s91 = sphi 0, %s77
      %s95 = sphi 0, %s95
      %s97 = sphi 0, %s95
      %s98 = sphi 0, %s97
      %s112 = sphi 0, %s98
      %s116 = sphi 0, %s116
      %s118 = sphi 0, %s116
      %s119 = sphi 0, %s118
      %s133 = sphi 0, %s119
      %s137 = sphi 0, %s137
      %s139 = sphi 0, %s137
      %s140 = sphi 0, %s139
      %s154 = sphi 0, %s140
      %s160 = sphi 0, %s162
      %s163 = sphi 0, %s160
      %s164 = sphi 0, %s163
      %s180 = sphi 0, %s164
    $region4: #{tpu_custom_call.1} parent=1 // loop_header_branch
      %22 = sbr.rel (%p20) target = $region8
    $region5: #{tpu_custom_call.1} parent=1 // loop_body
      %s24 = ssub.s32 %s19, 1
      %s25 = ssub.s32 %s19, 2
      %s26 = sadd.s32 %s19, 1
      %s28 = sadd.s32 %s27, 1
      %p31 = scmp.eq.s32.totalorder %s19, 1
      %p32 = scmp.ne.s32.totalorder %s27, %s29
      %p33 = scmp.eq.s32.totalorder %s19, 0
      %p34 = por %p32, %p33
      %p35 = scmp.ne.s32.totalorder %s27, %s29
      %p36 = scmp.eq.s32.totalorder %s24, 1
      %p37 = por %p35, %p36
      %p38 = scmp.ne.s32.totalorder %s29, %s30
      %p39 = scmp.eq.s32.totalorder %s24, 0
      %p40 = por %p38, %p39
      %p41 = scmp.ne.s32.totalorder %s29, %s30
      %p42 = scmp.eq.s32.totalorder %s25, 1
      %p43 = por %p41, %p42
      %p45 = scmp.ne.s32.totalorder %s30, %s44
      %p46 = scmp.eq.s32.totalorder %s25, 0
      %p47 = por %p45, %p46
      %s48 = ssub.s32 %s19, %s26
      %p49 = scmp.eq.s32.totalorder %s48, 0
      %s51 = sadd.s32 %s50, 1
      %s52 = scalar_select %p49, %s50, %s51
      %p55 = pneg %p49
      %p56 = scmp.eq.s32.totalorder %s19, 1
      %p57 = por %p55, %p56
      %p58 = scmp.ne.s32.totalorder %s50, %s53
      %p59 = scmp.eq.s32.totalorder %s19, 0
      %p60 = por %p58, %p59
      %p61 = scmp.ne.s32.totalorder %s50, %s53
      %p62 = scmp.eq.s32.totalorder %s24, 1
      %p63 = por %p61, %p62
      %p64 = scmp.ne.s32.totalorder %s53, %s54
      %p65 = scmp.eq.s32.totalorder %s24, 0
      %p66 = por %p64, %p65
      %p67 = scmp.ne.s32.totalorder %s53, %s54
      %p68 = scmp.eq.s32.totalorder %s25, 1
      %p69 = por %p67, %p68
      %p71 = scmp.ne.s32.totalorder %s54, %s70
      %p72 = scmp.eq.s32.totalorder %s25, 0
      %p73 = por %p71, %p72
      %s75 = sadd.s32 %s74, 1
      %p78 = scmp.eq.s32.totalorder %s19, 1
      %p79 = scmp.ne.s32.totalorder %s74, %s76
      %p80 = scmp.eq.s32.totalorder %s19, 0
      %p81 = por %p79, %p80
      %p82 = scmp.ne.s32.totalorder %s74, %s76
      %p83 = scmp.eq.s32.totalorder %s24, 1
      %p84 = por %p82, %p83
      %p85 = scmp.ne.s32.totalorder %s76, %s77
      %p86 = scmp.eq.s32.totalorder %s24, 0
      %p87 = por %p85, %p86
      %p88 = scmp.ne.s32.totalorder %s76, %s77
      %p89 = scmp.eq.s32.totalorder %s25, 1
      %p90 = por %p88, %p89
      %p92 = scmp.ne.s32.totalorder %s77, %s91
      %p93 = scmp.eq.s32.totalorder %s25, 0
      %p94 = por %p92, %p93
      %s96 = sadd.s32 %s95, 1
      %p99 = scmp.eq.s32.totalorder %s19, 1
      %p100 = scmp.ne.s32.totalorder %s95, %s97
      %p101 = scmp.eq.s32.totalorder %s19, 0
      %p102 = por %p100, %p101
      %p103 = scmp.ne.s32.totalorder %s95, %s97
      %p104 = scmp.eq.s32.totalorder %s24, 1
      %p105 = por %p103, %p104
      %p106 = scmp.ne.s32.totalorder %s97, %s98
      %p107 = scmp.eq.s32.totalorder %s24, 0
      %p108 = por %p106, %p107
      %p109 = scmp.ne.s32.totalorder %s97, %s98
      %p110 = scmp.eq.s32.totalorder %s25, 1
      %p111 = por %p109, %p110
      %p113 = scmp.ne.s32.totalorder %s98, %s112
      %p114 = scmp.eq.s32.totalorder %s25, 0
      %p115 = por %p113, %p114
      %s117 = sadd.s32 %s116, 1
      %p120 = scmp.eq.s32.totalorder %s19, 1
      %p121 = scmp.ne.s32.totalorder %s116, %s118
      %p122 = scmp.eq.s32.totalorder %s19, 0
      %p123 = por %p121, %p122
      %p124 = scmp.ne.s32.totalorder %s116, %s118
      %p125 = scmp.eq.s32.totalorder %s24, 1
      %p126 = por %p124, %p125
      %p127 = scmp.ne.s32.totalorder %s118, %s119
      %p128 = scmp.eq.s32.totalorder %s24, 0
      %p129 = por %p127, %p128
      %p130 = scmp.ne.s32.totalorder %s118, %s119
      %p131 = scmp.eq.s32.totalorder %s25, 1
      %p132 = por %p130, %p131
      %p134 = scmp.ne.s32.totalorder %s119, %s133
      %p135 = scmp.eq.s32.totalorder %s25, 0
      %p136 = por %p134, %p135
      %s138 = sadd.s32 %s137, 1
      %p141 = scmp.eq.s32.totalorder %s19, 1
      %p142 = scmp.ne.s32.totalorder %s137, %s139
      %p143 = scmp.eq.s32.totalorder %s19, 0
      %p144 = por %p142, %p143
      %p145 = scmp.ne.s32.totalorder %s137, %s139
      %p146 = scmp.eq.s32.totalorder %s24, 1
      %p147 = por %p145, %p146
      %p148 = scmp.ne.s32.totalorder %s139, %s140
      %p149 = scmp.eq.s32.totalorder %s24, 0
      %p150 = por %p148, %p149
      %p151 = scmp.ne.s32.totalorder %s139, %s140
      %p152 = scmp.eq.s32.totalorder %s25, 1
      %p153 = por %p151, %p152
      %p155 = scmp.ne.s32.totalorder %s140, %s154
      %p156 = scmp.eq.s32.totalorder %s25, 0
      %p157 = por %p155, %p156
      %s158 = ssub.s32 %s19, %s26
      %p159 = scmp.eq.s32.totalorder %s158, 0
      %s161 = sadd.s32 %s160, 1
      %s162 = scalar_select %p159, %s160, %s161
      %p165 = pneg %p159
      %p166 = scmp.eq.s32.totalorder %s19, 1
      %p167 = por %p165, %p166
      %p168 = scmp.ne.s32.totalorder %s160, %s163
      %p169 = scmp.eq.s32.totalorder %s19, 0
      %p170 = por %p168, %p169
      %p171 = scmp.ne.s32.totalorder %s160, %s163
      %p172 = scmp.eq.s32.totalorder %s24, 1
      %p173 = por %p171, %p172
      %p174 = scmp.ne.s32.totalorder %s163, %s164
      %p175 = scmp.eq.s32.totalorder %s24, 0
      %p176 = por %p174, %p175
      %p177 = scmp.ne.s32.totalorder %s163, %s164
      %p178 = scmp.eq.s32.totalorder %s25, 1
      %p179 = por %p177, %p178
      %p181 = scmp.ne.s32.totalorder %s164, %s180
      %p182 = scmp.eq.s32.totalorder %s25, 0
      %p183 = por %p181, %p182
      %p184 = scmp.le.s32.totalorder 1, %s19
      %p185 = scmp.lt.s32.totalorder %s19, 3
      %p186 = pnand %p184, %p185
      %p187 = pneg %p186
      // Predicated region
      $region9: #{tpu_custom_call.1} parent=5 // pred_check
        _
      $region10: #{tpu_custom_call.1} parent=5 // pred_check_branch
        %189 = sbr.rel (%p186) target = $region12
      $region11: #{tpu_custom_call.1} parent=5 // pred_region
        %s190 = ssub.s32 %s19, 1
        // Predicated region
        $region13: #{tpu_custom_call.1} parent=11 // pred_check
          %p191 = pneg %p40
        $region14: #{tpu_custom_call.1} parent=11 // pred_check_branch
          %193 = sbr.rel (%p191) target = $region16
        $region15: #{tpu_custom_call.1} parent=11 // pred_region
          %s195 = ssub.s32 512, 512
          %196 = vsyncadd [#allocation3], %s195
          %s197 = sshll.u32 [#allocation2], 4
          %s198 = int_to_ptr.vmem [resolvable:$true] %s197
          %203 = dma.hbm_to_vmem [thread:$0]  %s0, 512, %s198, [#allocation3], 256, 256, 16
        $region16: #{tpu_custom_call.1} parent=11 // pred_fallthru
          _
        // Predicated region
        $region17: #{tpu_custom_call.1} parent=11 // pred_check
          %p204 = pneg %p87
        $region18: #{tpu_custom_call.1} parent=11 // pred_check_branch
          %206 = sbr.rel (%p204) target = $region20
        $region19: #{tpu_custom_call.1} parent=11 // pred_region
          _
        $region20: #{tpu_custom_call.1} parent=11 // pred_fallthru
          _
        // Predicated region
        $region21: #{tpu_custom_call.1} parent=11 // pred_check
          %p207 = pneg %p108
        $region22: #{tpu_custom_call.1} parent=11 // pred_check_branch
          %209 = sbr.rel (%p207) target = $region24
        $region23: #{tpu_custom_call.1} parent=11 // pred_region
          _
        $region24: #{tpu_custom_call.1} parent=11 // pred_fallthru
          _
        // Predicated region
        $region25: #{tpu_custom_call.1} parent=11 // pred_check
          %p210 = pneg %p129
        $region26: #{tpu_custom_call.1} parent=11 // pred_check_branch
          %212 = sbr.rel (%p210) target = $region28
        $region27: #{tpu_custom_call.1} parent=11 // pred_region
          _
        $region28: #{tpu_custom_call.1} parent=11 // pred_fallthru
          _
        // Predicated region
        $region29: #{tpu_custom_call.1} parent=11 // pred_check
          %p213 = pneg %p150
        $region30: #{tpu_custom_call.1} parent=11 // pred_check_branch
          %215 = sbr.rel (%p213) target = $region32
        $region31: #{tpu_custom_call.1} parent=11 // pred_region
          _
        $region32: #{tpu_custom_call.1} parent=11 // pred_fallthru
          _
      $region12: #{tpu_custom_call.1} parent=5 // pred_fallthru
        _
      %p216 = scmp.lt.s32.totalorder %s19, 2
      // Predicated region
      $region33: #{tpu_custom_call.1} parent=5 // pred_check
        %p217 = pneg %p216
      $region34: #{tpu_custom_call.1} parent=5 // pred_check_branch
        %219 = sbr.rel (%p217) target = $region36
      $region35: #{tpu_custom_call.1} parent=5 // pred_region
        // Predicated region
        $region37: #{tpu_custom_call.1} parent=35 // pred_check
          %p220 = pneg %p60
        $region38: #{tpu_custom_call.1} parent=35 // pred_check_branch
          %222 = sbr.rel (%p220) target = $region40
        $region39: #{tpu_custom_call.1} parent=35 // pred_region
          %s223 = sand.u32 %s50, 1
          %s224 = scalar_lea.sflag [#allocation6], %s223
          %s225 = sand.u32 %s50, 1
          %s226 = smul.addr %s225, 8
          %s227 = scalar_lea.vmem [#allocation5], %s226
          %s229 = ssub.s32 128, 128
          %230 = vsyncadd %s224, %s229
          %s231 = smul.addr %s19, 2
          %s232 = smul.addr %s231, 64
          %s233 = scalar_lea.hbm %s1, %s232
          %s235 = sshll.u32 %s227, 4
          %s236 = int_to_ptr.vmem [resolvable:$true] %s235
          %238 = dma.hbm_to_vmem [thread:$0]  %s233, 128, %s236, %s224
        $region40: #{tpu_custom_call.1} parent=35 // pred_fallthru
          _
      $region36: #{tpu_custom_call.1} parent=5 // pred_fallthru
        _
      %p239 = scmp.le.s32.totalorder 1, %s19
      %p240 = scmp.lt.s32.totalorder %s19, 3
      %p241 = pnand %p239, %p240
      %p242 = pneg %p241
      // Predicated region
      $region41: #{tpu_custom_call.1} parent=5 // pred_check
        _
      $region42: #{tpu_custom_call.1} parent=5 // pred_check_branch
        %244 = sbr.rel (%p241) target = $region44
      $region43: #{tpu_custom_call.1} parent=5 // pred_region
        %s245 = ssub.s32 %s19, 1
        // Predicated region
        $region45: #{tpu_custom_call.1} parent=43 // pred_check
          %p246 = pneg %p40
        $region46: #{tpu_custom_call.1} parent=43 // pred_check_branch
          %248 = sbr.rel (%p246) target = $region48
        $region47: #{tpu_custom_call.1} parent=43 // pred_region
          %249 = dma.done [#allocation3], 512
        $region48: #{tpu_custom_call.1} parent=43 // pred_fallthru
          _
        %s250 = sand.u32 %s53, 1
        %s251 = scalar_lea.sflag [#allocation6], %s250
        %s252 = sand.u32 %s53, 1
        %s253 = smul.addr %s252, 8
        %s254 = scalar_lea.vmem [#allocation5], %s253
        // Predicated region
        $region49: #{tpu_custom_call.1} parent=43 // pred_check
          %p255 = pneg %p66
        $region50: #{tpu_custom_call.1} parent=43 // pred_check_branch
          %257 = sbr.rel (%p255) target = $region52
        $region51: #{tpu_custom_call.1} parent=43 // pred_region
          %258 = dma.done %s251, 128
        $region52: #{tpu_custom_call.1} parent=43 // pred_fallthru
          _
        %p259 = pneg %p40
        %p260 = pneg %p37
        %s261 = sand.u32 %s53, 1
        %s262 = scalar_lea.sflag [#allocation6], %s261
        %s263 = sand.u32 %s53, 1
        %s264 = smul.addr %s263, 8
        %s265 = scalar_lea.vmem [#allocation5], %s264
        %p266 = pneg %p66
        %p267 = pneg %p63
        %p268 = pneg %p87
        %p269 = pneg %p84
        %p270 = pneg %p108
        %p271 = pneg %p105
        %p272 = pneg %p129
        %p273 = pneg %p126
        %p274 = pneg %p150
        %p275 = pneg %p147
        %p276 = pneg %p176
        %p277 = pneg %p173
        %s278 = sand.u32 %s163, 1
        %s279 = scalar_lea.sflag [#allocation4], %s278
        %s280 = sand.u32 %s163, 1
        %s281 = smul.addr %s280, 8
        %s282 = scalar_lea.vmem [#allocation7], %s281
        %v283 = vld [vmem:[#allocation2] sm:$0xff]
        %v284 = vld [vmem:[#allocation2 + $0x8] sm:$0xff]
        %v285 = vld [vmem:[#allocation2 + $0x10] sm:$0x1]
        %v286 = vld [vmem:[#allocation2 + $0x18] sm:$0x1]
        %v287 = vld [vmem:[%s254] sm:$0xff]
        %v289 = vcombine.high %v287, %v287
        %291 = vrot.lane.b32.xlu0 %v287, 17
        %v292 = vpop.permute.xlu0 %291
        %293 = vrot.lane.b32.xlu0 %v289, 17
        %v294 = vpop.permute.xlu0 %293
        %v295 = vlaneseq
        %v296 = vand.u32 %v295, 127
        %vm297 = vcmp.lt.s32.totalorder %v296, 17
        %v298 = vsel %vm297, %v292, %v294
        %v299 = vsel %vm297, %v294, %v292
        %v300 = vlaneseq
        %v301 = vshrl.u32 %v300, 7
        %v302 = vsub.s32 0, %v301
        %v303 = vrot.slane %v283, %v302
        %v304 = vlaneseq
        %v305 = vshrl.u32 %v304, 7
        %v306 = vsub.s32 0, %v305
        %v307 = vrot.slane %v284, %v306
        %v308 = vmul.f32 %v299, %v303
        %v309 = vmul.f32 %v298, %v307
        %310 = vrot.lane.b32.xlu0 %v287, 16
        %v311 = vpop.permute.xlu0 %310
        %312 = vrot.lane.b32.xlu0 %v289, 16
        %v313 = vpop.permute.xlu0 %312
        %vm314 = vcmp.lt.s32.totalorder %v296, 16
        %v315 = vsel %vm314, %v311, %v313
        %v316 = vsel %vm314, %v313, %v311
        %v317 = vlaneseq
        %v318 = vshrl.u32 %v317, 7
        %v319 = vsub.s32 1, %v318
        %v320 = vrot.slane %v283, %v319
        %v321 = vlaneseq
        %v322 = vshrl.u32 %v321, 7
        %v323 = vsub.s32 1, %v322
        %v324 = vrot.slane %v284, %v323
        %v325 = vmul.f32 %v316, %v320
        %v326 = vmul.f32 %v315, %v324
        %327 = vrot.lane.b32.xlu0 %v287, 15
        %v328 = vpop.permute.xlu0 %327
        %329 = vrot.lane.b32.xlu0 %v289, 15
        %v330 = vpop.permute.xlu0 %329
        %vm331 = vcmp.lt.s32.totalorder %v296, 15
        %v332 = vsel %vm331, %v328, %v330
        %v333 = vsel %vm331, %v330, %v328
        %v334 = vlaneseq
        %v335 = vshrl.u32 %v334, 7
        %v336 = vsub.s32 2, %v335
        %v337 = vrot.slane %v283, %v336
        %v338 = vlaneseq
        %v339 = vshrl.u32 %v338, 7
        %v340 = vsub.s32 2, %v339
        %v341 = vrot.slane %v284, %v340
        %v342 = vmul.f32 %v333, %v337
        %v343 = vmul.f32 %v332, %v341
        %344 = vrot.lane.b32.xlu0 %v287, 1
        %v345 = vpop.permute.xlu0 %344
        %346 = vrot.lane.b32.xlu0 %v289, 1
        %v347 = vpop.permute.xlu0 %346
        %vm348 = vcmp.lt.s32.totalorder %v296, 1
        %v349 = vsel %vm348, %v345, %v347
        %v350 = vsel %vm348, %v347, %v345
        %v351 = vlaneseq
        %v352 = vshrl.u32 %v351, 7
        %v353 = vsub.s32 3, %v352
        %v354 = vrot.slane %v283, %v353
        %v355 = vlaneseq
        %v356 = vshrl.u32 %v355, 7
        %v357 = vsub.s32 3, %v356
        %v358 = vrot.slane %v284, %v357
        %v359 = vmul.f32 %v350, %v354
        %v360 = vmul.f32 %v349, %v358
        %v361 = vlaneseq
        %v362 = vshrl.u32 %v361, 7
        %v363 = vsub.s32 4, %v362
        %v364 = vrot.slane %v283, %v363
        %v365 = vlaneseq
        %v366 = vshrl.u32 %v365, 7
        %v367 = vsub.s32 4, %v366
        %v368 = vrot.slane %v284, %v367
        %v371 = vcombine.low %v364, %v368
        %v373 = vmul.f32 %v287, %v371
        %374 = vrot.lane.b32.xlu0 %v287, 127
        %v375 = vpop.permute.xlu0 %374
        %376 = vrot.lane.b32.xlu0 %v289, 127
        %v377 = vpop.permute.xlu0 %376
        %vm378 = vcmp.lt.s32.totalorder %v296, 127
        %v379 = vsel %vm378, %v375, %v377
        %v380 = vsel %vm378, %v377, %v375
        %v381 = vlaneseq
        %v382 = vshrl.u32 %v381, 7
        %v383 = vsub.s32 5, %v382
        %v384 = vrot.slane %v283, %v383
        %v385 = vlaneseq
        %v386 = vshrl.u32 %v385, 7
        %v387 = vsub.s32 5, %v386
        %v388 = vrot.slane %v284, %v387
        %v389 = vmul.f32 %v379, %v384
        %v390 = vmul.f32 %v380, %v388
        %391 = vrot.lane.b32.xlu0 %v287, 113
        %v392 = vpop.permute.xlu0 %391
        %393 = vrot.lane.b32.xlu0 %v289, 113
        %v394 = vpop.permute.xlu0 %393
        %vm395 = vcmp.lt.s32.totalorder %v296, 113
        %v396 = vsel %vm395, %v392, %v394
        %v397 = vsel %vm395, %v394, %v392
        %v398 = vlaneseq
        %v399 = vshrl.u32 %v398, 7
        %v400 = vsub.s32 6, %v399
        %v401 = vrot.slane %v283, %v400
        %v402 = vlaneseq
        %v403 = vshrl.u32 %v402, 7
        %v404 = vsub.s32 6, %v403
        %v405 = vrot.slane %v284, %v404
        %v406 = vmul.f32 %v396, %v401
        %v407 = vmul.f32 %v397, %v405
        %408 = vrot.lane.b32.xlu0 %v287, 112
        %v409 = vpop.permute.xlu0 %408
        %410 = vrot.lane.b32.xlu0 %v289, 112
        %v411 = vpop.permute.xlu0 %410
        %vm412 = vcmp.lt.s32.totalorder %v296, 112
        %v413 = vsel %vm412, %v409, %v411
        %v414 = vsel %vm412, %v411, %v409
        %v415 = vlaneseq
        %v416 = vshrl.u32 %v415, 7
        %v417 = vsub.s32 7, %v416
        %v418 = vrot.slane %v283, %v417
        %v419 = vlaneseq
        %v420 = vshrl.u32 %v419, 7
        %v421 = vsub.s32 7, %v420
        %v422 = vrot.slane %v284, %v421
        %v423 = vmul.f32 %v413, %v418
        %v424 = vmul.f32 %v414, %v422
        %425 = vrot.lane.b32.xlu0 %v287, 111
        %v426 = vpop.permute.xlu0 %425
        %427 = vrot.lane.b32.xlu0 %v289, 111
        %v428 = vpop.permute.xlu0 %427
        %vm429 = vcmp.lt.s32.totalorder %v296, 111
        %v430 = vsel %vm429, %v426, %v428
        %v431 = vsel %vm429, %v428, %v426
        %v432 = vlaneseq
        %v433 = vshrl.u32 %v432, 7
        %v434 = vsub.s32 0, %v433
        %v435 = vrot.slane %v285, %v434
        %v436 = vlaneseq
        %v437 = vshrl.u32 %v436, 7
        %v438 = vsub.s32 0, %v437
        %v439 = vrot.slane %v286, %v438
        %v440 = vmul.f32 %v430, %v435
        %v441 = vmul.f32 %v431, %v439
        %v444 = vrot.slane %v325, 4
        %v445 = vrot.slane %v326, 4
        %v450 = vrot.slane %v359, 4
        %v451 = vrot.slane %v360, 4
        %v455 = vcombine.high %v373, %v373
        %v459 = vrot.slane %v389, 4
        %v460 = vrot.slane %v390, 4
        %v465 = vrot.slane %v423, 4
        %v466 = vrot.slane %v424, 4
        %vm469 = vcmask 1043456
        %v470 = vsel %vm469, %v308, %v444
        %v471 = vsel %vm469, %v309, %v445
        %v472 = vsel %vm469, %v342, %v450
        %v473 = vsel %vm469, %v343, %v451
        %v474 = vsel %vm469, %v373, %v459
        %v475 = vsel %vm469, %v455, %v460
        %v476 = vsel %vm469, %v406, %v465
        %v477 = vsel %vm469, %v407, %v466
        %v478 = vld [vmem:[%s2] sm:$0x3]
        %v479 = vld [vmem:[%s3] sm:$0x3]
        %481 = vset.pattern.permute.xlu0 0
        %482 = vperm.xlu0 %481, %v479
        %v483 = vpop.permute.xlu0 %482
        %vm485 = vcmask 293888
        %v487 = vsel %vm485, %v478, 0
        %v490 = vsel %vm469, %v440, 0
        %v493 = vsel %vm469, %v441, 0
        %495 = vmatprep.subr.mxu0 0.0
        %496 = vmatpush1.msra.mxu0 0.0
        %497 = vmatprep.subr.mxu0 0.0
        %498 = vmatpush1.msra.mxu0 0.0
        %499 = vmatprep.subr.mxu0 0.0
        %500 = vmatpush1.msra.mxu0 0.0
        %501 = vmatprep.subr.mxu0 0.0
        %502 = vmatpush1.msra.mxu0 0.0
        %503 = vmatprep.subr.mxu0 0.0
        %504 = vmatpush1.msra.mxu0 0.0
        %505 = vmatprep.subr.mxu0 0.0
        %506 = vmatpush1.msra.mxu0 0.0
        %507 = vmatprep.subr.mxu0 0.0
        %508 = vmatpush1.msra.mxu0 0.0
        %509 = vmatprep.subr.mxu0 0.0
        %510 = vmatpush1.msra.mxu0 0.0
        %511 = vmatprep.subr.mxu0 0.0
        %512 = vmatpush1.msra.mxu0 0.0
        %513 = vmatprep.subr.mxu0 0.0
        %514 = vmatpush1.msra.mxu0 0.0
        %515 = vmatprep.subr.mxu0 0.0
        %516 = vmatpush1.msra.mxu0 0.0
        %517 = vmatprep.subr.mxu0 %v493
        %518 = vmatpush1.msra.mxu0 %v490
        %519 = vmatprep.subr.mxu0 %v477
        %520 = vmatpush1.msra.mxu0 %v476
        %521 = vmatprep.subr.mxu0 %v475
        %522 = vmatpush1.msra.mxu0 %v474
        %523 = vmatprep.subr.mxu0 %v473
        %524 = vmatpush1.msra.mxu0 %v472
        %525 = vmatprep.subr.mxu0 %v471
        %526 = vmatpush1.msra.mxu0 %v470
        %527 = vmatprep.subr.mxu0 0.0
        %528 = vmatpush2.msra.mxu0 0.0
        %529 = vmatprep.subr.mxu0 0.0
        %530 = vmatpush2.msra.mxu0 0.0
        %531 = vmatprep.subr.mxu0 0.0
        %532 = vmatpush2.msra.mxu0 0.0
        %533 = vmatprep.subr.mxu0 0.0
        %534 = vmatpush2.msra.mxu0 0.0
        %535 = vmatprep.subr.mxu0 0.0
        %536 = vmatpush2.msra.mxu0 0.0
        %537 = vmatprep.subr.mxu0 0.0
        %538 = vmatpush2.msra.mxu0 0.0
        %539 = vmatprep.subr.mxu0 0.0
        %540 = vmatpush2.msra.mxu0 0.0
        %541 = vmatprep.subr.mxu0 0.0
        %542 = vmatpush2.msra.mxu0 0.0
        %543 = vmatprep.subr.mxu0 0.0
        %544 = vmatpush2.msra.mxu0 0.0
        %545 = vmatprep.subr.mxu0 0.0
        %546 = vmatpush2.msra.mxu0 0.0
        %547 = vmatprep.subr.mxu0 0.0
        %548 = vmatpush2.msra.mxu0 0.0
        %549 = vmatprep.subr.mxu0 0.0
        %550 = vmatpush2.msra.mxu0 0.0
        %551 = vmatprep.subr.mxu0 0.0
        %552 = vmatpush2.msra.mxu0 0.0
        %553 = vmatprep.subr.mxu0 0.0
        %554 = vmatpush2.msra.mxu0 0.0
        %555 = vmatprep.subr.mxu0 0.0
        %556 = vmatpush2.msra.mxu0 0.0
        %557 = vmatprep.subr.mxu0 0.0
        %558 = vmatpush2.msra.mxu0 0.0
        %559 = vmatprep.mubr.f32.mxu0 0.0
        %560 = vmatmul.mubr.f32.gmra.mxu0 %v487
        %v561 = vpop.f32.mrf.mxu0
        %v562 = vadd.f32 %v483, %v561
        %v563 = vpop.f32.mrf.mxu0
        %v564 = vadd.f32 %v483, %v563
        %565 = vdwg.mxu0
        %v566 = vxor.u32 %v562, 2147483648
        %v567 = vxor.u32 %v564, 2147483648
        %v568 = vmul.f32 %v566, 1.442695
        %v569 = vpow.pop %v568
        %v570 = vmul.f32 %v567, 1.442695
        %v571 = vpow.pop %v570
        %v572 = vadd.f32 %v569, 1.0
        %v573 = vadd.f32 %v571, 1.0
        %v574 = vrcp.pop %v572
        %v575 = vmul.f32 1.0, %v574
        %v576 = vrcp.pop %v573
        %v577 = vmul.f32 1.0, %v576
        %v578 = vmul.f32 %v562, %v575
        %v579 = vmul.f32 %v564, %v577
        %580 = vrot.lane.b32.xlu0 %v578, 17
        %v581 = vpop.permute.xlu0 %580
        %582 = vrot.lane.b32.xlu0 %v579, 17
        %v583 = vpop.permute.xlu0 %582
        %v584 = vsel %vm297, %v581, %v583
        %v585 = vsel %vm297, %v583, %v581
        %v586 = vmul.f32 %v585, %v303
        %v587 = vmul.f32 %v584, %v307
        %588 = vrot.lane.b32.xlu0 %v578, 16
        %v589 = vpop.permute.xlu0 %588
        %590 = vrot.lane.b32.xlu0 %v579, 16
        %v591 = vpop.permute.xlu0 %590
        %v592 = vsel %vm314, %v589, %v591
        %v593 = vsel %vm314, %v591, %v589
        %v594 = vmul.f32 %v593, %v320
        %v595 = vmul.f32 %v592, %v324
        %596 = vrot.lane.b32.xlu0 %v578, 15
        %v597 = vpop.permute.xlu0 %596
        %598 = vrot.lane.b32.xlu0 %v579, 15
        %v599 = vpop.permute.xlu0 %598
        %v600 = vsel %vm331, %v597, %v599
        %v601 = vsel %vm331, %v599, %v597
        %v602 = vmul.f32 %v601, %v337
        %v603 = vmul.f32 %v600, %v341
        %604 = vrot.lane.b32.xlu0 %v578, 1
        %v605 = vpop.permute.xlu0 %604
        %606 = vrot.lane.b32.xlu0 %v579, 1
        %v607 = vpop.permute.xlu0 %606
        %v608 = vsel %vm348, %v605, %v607
        %v609 = vsel %vm348, %v607, %v605
        %v610 = vmul.f32 %v609, %v354
        %v611 = vmul.f32 %v608, %v358
        %v612 = vmul.f32 %v578, %v364
        %v613 = vmul.f32 %v579, %v368
        %614 = vrot.lane.b32.xlu0 %v578, 127
        %v615 = vpop.permute.xlu0 %614
        %616 = vrot.lane.b32.xlu0 %v579, 127
        %v617 = vpop.permute.xlu0 %616
        %v618 = vsel %vm378, %v615, %v617
        %v619 = vsel %vm378, %v617, %v615
        %v620 = vmul.f32 %v618, %v384
        %v621 = vmul.f32 %v619, %v388
        %622 = vrot.lane.b32.xlu0 %v578, 113
        %v623 = vpop.permute.xlu0 %622
        %624 = vrot.lane.b32.xlu0 %v579, 113
        %v625 = vpop.permute.xlu0 %624
        %v626 = vsel %vm395, %v623, %v625
        %v627 = vsel %vm395, %v625, %v623
        %v628 = vmul.f32 %v626, %v401
        %v629 = vmul.f32 %v627, %v405
        %630 = vrot.lane.b32.xlu0 %v578, 112
        %v631 = vpop.permute.xlu0 %630
        %632 = vrot.lane.b32.xlu0 %v579, 112
        %v633 = vpop.permute.xlu0 %632
        %v634 = vsel %vm412, %v631, %v633
        %v635 = vsel %vm412, %v633, %v631
        %v636 = vmul.f32 %v634, %v418
        %v637 = vmul.f32 %v635, %v422
        %638 = vrot.lane.b32.xlu0 %v578, 111
        %v639 = vpop.permute.xlu0 %638
        %640 = vrot.lane.b32.xlu0 %v579, 111
        %v641 = vpop.permute.xlu0 %640
        %v642 = vsel %vm429, %v639, %v641
        %v643 = vsel %vm429, %v641, %v639
        %v644 = vmul.f32 %v642, %v435
        %v645 = vmul.f32 %v643, %v439
        %v648 = vrot.slane %v594, 6
        %v649 = vrot.slane %v595, 6
        %v654 = vrot.slane %v602, 4
        %v655 = vrot.slane %v603, 4
        %v660 = vrot.slane %v610, 2
        %v661 = vrot.slane %v611, 2
        %v666 = vrot.slane %v620, 6
        %v667 = vrot.slane %v621, 6
        %v672 = vrot.slane %v628, 4
        %v673 = vrot.slane %v629, 4
        %v678 = vrot.slane %v636, 2
        %v679 = vrot.slane %v637, 2
        %vm682 = vcmask 1041408
        %v683 = vsel %vm682, %v586, %v648
        %v684 = vsel %vm682, %v587, %v649
        %v685 = vsel %vm469, %v683, %v654
        %v686 = vsel %vm469, %v684, %v655
        %vm687 = vcmask 1045504
        %v688 = vsel %vm687, %v685, %v660
        %v689 = vsel %vm687, %v686, %v661
        %v690 = vsel %vm682, %v612, %v666
        %v691 = vsel %vm682, %v613, %v667
        %v692 = vsel %vm469, %v690, %v672
        %v693 = vsel %vm469, %v691, %v673
        %v694 = vsel %vm687, %v692, %v678
        %v695 = vsel %vm687, %v693, %v679
        %v696 = vld [vmem:[%s4] sm:$0xf]
        %v697 = vld [vmem:[%s5] sm:$0xf]
        %699 = vset.pattern.permute.xlu0 0
        %700 = vperm.xlu0 %699, %v697
        %v701 = vpop.permute.xlu0 %700
        %vm703 = vcmask 146432
        %v705 = vsel %vm703, %v696, 0
        %v708 = vsel %vm682, %v644, 0
        %v711 = vsel %vm682, %v645, 0
        %713 = vmatprep.subr.mxu0 0.0
        %714 = vmatpush1.msra.mxu0 0.0
        %715 = vmatprep.subr.mxu0 0.0
        %716 = vmatpush1.msra.mxu0 0.0
        %717 = vmatprep.subr.mxu0 0.0
        %718 = vmatpush1.msra.mxu0 0.0
        %719 = vmatprep.subr.mxu0 0.0
        %720 = vmatpush1.msra.mxu0 0.0
        %721 = vmatprep.subr.mxu0 0.0
        %722 = vmatpush1.msra.mxu0 0.0
        %723 = vmatprep.subr.mxu0 0.0
        %724 = vmatpush1.msra.mxu0 0.0
        %725 = vmatprep.subr.mxu0 0.0
        %726 = vmatpush1.msra.mxu0 0.0
        %727 = vmatprep.subr.mxu0 0.0
        %728 = vmatpush1.msra.mxu0 0.0
        %729 = vmatprep.subr.mxu0 0.0
        %730 = vmatpush1.msra.mxu0 0.0
        %731 = vmatprep.subr.mxu0 0.0
        %732 = vmatpush1.msra.mxu0 0.0
        %733 = vmatprep.subr.mxu0 0.0
        %734 = vmatpush1.msra.mxu0 0.0
        %735 = vmatprep.subr.mxu0 0.0
        %736 = vmatpush1.msra.mxu0 0.0
        %737 = vmatprep.subr.mxu0 0.0
        %738 = vmatpush1.msra.mxu0 0.0
        %739 = vmatprep.subr.mxu0 %v711
        %740 = vmatpush1.msra.mxu0 %v708
        %741 = vmatprep.subr.mxu0 %v695
        %742 = vmatpush1.msra.mxu0 %v694
        %743 = vmatprep.subr.mxu0 %v689
        %744 = vmatpush1.msra.mxu0 %v688
        %745 = vmatprep.subr.mxu0 0.0
        %746 = vmatpush2.msra.mxu0 0.0
        %747 = vmatprep.subr.mxu0 0.0
        %748 = vmatpush2.msra.mxu0 0.0
        %749 = vmatprep.subr.mxu0 0.0
        %750 = vmatpush2.msra.mxu0 0.0
        %751 = vmatprep.subr.mxu0 0.0
        %752 = vmatpush2.msra.mxu0 0.0
        %753 = vmatprep.subr.mxu0 0.0
        %754 = vmatpush2.msra.mxu0 0.0
        %755 = vmatprep.subr.mxu0 0.0
        %756 = vmatpush2.msra.mxu0 0.0
        %757 = vmatprep.subr.mxu0 0.0
        %758 = vmatpush2.msra.mxu0 0.0
        %759 = vmatprep.subr.mxu0 0.0
        %760 = vmatpush2.msra.mxu0 0.0
        %761 = vmatprep.subr.mxu0 0.0
        %762 = vmatpush2.msra.mxu0 0.0
        %763 = vmatprep.subr.mxu0 0.0
        %764 = vmatpush2.msra.mxu0 0.0
        %765 = vmatprep.subr.mxu0 0.0
        %766 = vmatpush2.msra.mxu0 0.0
        %767 = vmatprep.subr.mxu0 0.0
        %768 = vmatpush2.msra.mxu0 0.0
        %769 = vmatprep.subr.mxu0 0.0
        %770 = vmatpush2.msra.mxu0 0.0
        %771 = vmatprep.subr.mxu0 0.0
        %772 = vmatpush2.msra.mxu0 0.0
        %773 = vmatprep.subr.mxu0 0.0
        %774 = vmatpush2.msra.mxu0 0.0
        %775 = vmatprep.subr.mxu0 0.0
        %776 = vmatpush2.msra.mxu0 0.0
        %777 = vmatprep.mubr.f32.mxu0 0.0
        %778 = vmatmul.mubr.f32.gmra.mxu0 %v705
        %v779 = vpop.f32.mrf.mxu0
        %v780 = vadd.f32 %v701, %v779
        %v781 = vpop.f32.mrf.mxu0
        %v782 = vadd.f32 %v701, %v781
        %783 = vdwg.mxu0
        %v784 = vxor.u32 %v780, 2147483648
        %v785 = vxor.u32 %v782, 2147483648
        %v786 = vmul.f32 %v784, 1.442695
        %v787 = vpow.pop %v786
        %v788 = vmul.f32 %v785, 1.442695
        %v789 = vpow.pop %v788
        %v790 = vadd.f32 %v787, 1.0
        %v791 = vadd.f32 %v789, 1.0
        %v792 = vrcp.pop %v790
        %v793 = vmul.f32 1.0, %v792
        %v794 = vrcp.pop %v791
        %v795 = vmul.f32 1.0, %v794
        %v796 = vmul.f32 %v780, %v793
        %v797 = vmul.f32 %v782, %v795
        %v798 = vadd.f32 %v796, %v287
        %v799 = vadd.f32 %v797, %v289
        %v802 = vcombine.low %v798, %v799
        %804 = vst [vmem:[%s282] sm:$0xff] %v802
        %s805 = sand.u32 %s163, 1
        %s806 = scalar_lea.sflag [#allocation4], %s805
        %s807 = sand.u32 %s163, 1
        %s808 = smul.addr %s807, 8
        %s809 = scalar_lea.vmem [#allocation7], %s808
        // Predicated region
        $region53: #{tpu_custom_call.1} parent=43 // pred_check
          %p810 = pneg %p173
        $region54: #{tpu_custom_call.1} parent=43 // pred_check_branch
          %812 = sbr.rel (%p810) target = $region56
        $region55: #{tpu_custom_call.1} parent=43 // pred_region
          %s814 = ssub.s32 128, 128
          %815 = vsyncadd %s806, %s814
          %s816 = smul.addr %s24, 2
          %s817 = smul.addr %s816, 64
          %s818 = scalar_lea.hbm %s6, %s817
          %s820 = sshll.u32 %s809, 4
          %s821 = int_to_ptr.vmem [resolvable:$true] %s820
          %823 = dma.vmem_to_hbm [thread:$0]  %s821, 128, %s818, %s806
        $region56: #{tpu_custom_call.1} parent=43 // pred_fallthru
          _
      $region44: #{tpu_custom_call.1} parent=5 // pred_fallthru
        _
      %p824 = scmp.le.s32.totalorder 2, %s19
      // Predicated region
      $region57: #{tpu_custom_call.1} parent=5 // pred_check
        %p825 = pneg %p824
      $region58: #{tpu_custom_call.1} parent=5 // pred_check_branch
        %827 = sbr.rel (%p825) target = $region60
      $region59: #{tpu_custom_call.1} parent=5 // pred_region
        %s828 = ssub.s32 %s19, 2
        // Predicated region
        $region61: #{tpu_custom_call.1} parent=59 // pred_check
          %p829 = pneg %p179
        $region62: #{tpu_custom_call.1} parent=59 // pred_check_branch
          %831 = sbr.rel (%p829) target = $region64
        $region63: #{tpu_custom_call.1} parent=59 // pred_region
          %s832 = sand.u32 %s164, 1
          %s833 = scalar_lea.sflag [#allocation4], %s832
          %s834 = sand.u32 %s164, 1
          %s835 = smul.addr %s834, 8
          %s836 = scalar_lea.vmem [#allocation7], %s835
          %837 = dma.done %s833, 128
        $region64: #{tpu_custom_call.1} parent=59 // pred_fallthru
          _
      $region60: #{tpu_custom_call.1} parent=5 // pred_fallthru
        _
    $region6: #{tpu_custom_call.1} parent=1 // loop_footer
      %s23 = sadd.s32 1, %s19
    $region7: #{tpu_custom_call.1} parent=1 // loop_footer_branch
      %18 = sbr.rel target = $region3
    $region8: #{tpu_custom_call.1} parent=1 // loop_exit
      _
    %838 = vsyncpa [#allocation3], 1
    %s839 = scalar_lea.sflag [#allocation3], 1
    %840 = vsyncpa %s839, 1
    %841 = vsyncpa [#allocation6], 1
    %s842 = scalar_lea.sflag [#allocation6], 1
    %843 = vsyncpa %s842, 1
    %844 = vsyncpa [#allocation4], 1
    %s845 = scalar_lea.sflag [#allocation4], 1
    %846 = vsyncpa %s845, 1

</llo_original>
